<compile_context>
chip_gen: v7x
topology: tpu7x:2x2x1
jax: 0.10.0
libtpu: 0.0.40
codegen_flags: <defaults>
</compile_context>

<pallas_src>
import jax
import jax.numpy as jnp
from jax.experimental import pallas as pl
from jax.experimental.pallas import tpu as pltpu


# ---------------------------------------------------------------------------
# helpers
# ---------------------------------------------------------------------------
def _pick_lane_block(L, max_block=2048):
    """Largest multiple-of-128 divisor of L that is <= max_block (VMEM-safe)."""
    if L % 128 != 0:
        return L                      # full-dim block (allowed when == array dim)
    blk = min(L, max_block)
    blk -= blk % 128
    while L % blk != 0:
        blk -= 128
    return blk


def _chebyshev_stack(adj, K):
    """Exact replica of cheby_conv's basis construction:
       L0 = I, L1 = adj, L_k = 2 * L_{k-1} @ L_{k-1} - L_{k-2}."""
    n = adj.shape[0]
    L0 = jnp.eye(n, dtype=adj.dtype)
    L1 = adj
    Ls = [L0, L1]
    for _ in range(2, K):
        L2 = 2.0 * jnp.matmul(L1, L1) - L0
        L0, L1 = L1, L2
        Ls.append(L2)
    return jnp.stack(Ls, axis=0)      # (K, N, N)


# ---------------------------------------------------------------------------
# kernel 1: fused input convs (conv_1 and conv1 as channel matmuls)
#   x_input1[b] = W1 @ x[b]      + b1
#   x1[b]       = Wt @ x_taps[b] + bt      (im2col'd (1,Kt) conv)
# ---------------------------------------------------------------------------
def _input_convs_kernel(x_ref, xt_ref, w1_ref, b1_ref, wt_ref, bt_ref,
                        xin_ref, x1_ref):
    # x_ref: (1, Cin, Lblk)   xt_ref: (1, Cin*Kt, Lblk)
    xin_ref[0] = (jnp.dot(w1_ref[...], x_ref[0],
                          preferred_element_type=jnp.float32)
                  + b1_ref[...]).astype(xin_ref.dtype)
    x1_ref[0] = (jnp.dot(wt_ref[...], xt_ref[0],
                         preferred_element_type=jnp.float32)
                 + bt_ref[...]).astype(x1_ref.dtype)


def _input_convs(x_flat, x_taps, w1, b1_col, wt, bt_col):
    B, Cin, L = x_flat.shape
    CinKt = x_taps.shape[1]
    Cout = w1.shape[0]
    lblk = _pick_lane_block(L)
    cost = pl.CostEstimate(
        flops=2 * B * L * Cout * (Cin + CinKt),
        transcendentals=0,
        bytes_accessed=4 * (B * (Cin + CinKt) * L
                            + Cout * (Cin + CinKt + 2)
                            + 2 * B * Cout * L))
    return pl.pallas_call(
        _input_convs_kernel,
        out_shape=(jax.ShapeDtypeStruct((B, Cout, L), x_flat.dtype),
                   jax.ShapeDtypeStruct((B, Cout, L), x_flat.dtype)),
        grid_spec=pl.GridSpec(
            grid=(B, L // lblk),
            in_specs=[
                pl.BlockSpec((1, Cin, lblk), lambda b, j: (b, 0, j)),
                pl.BlockSpec((1, CinKt, lblk), lambda b, j: (b, 0, j)),
                pl.BlockSpec((Cout, Cin), lambda b, j: (0, 0)),
                pl.BlockSpec((Cout, 1), lambda b, j: (0, 0)),
                pl.BlockSpec((Cout, CinKt), lambda b, j: (0, 0)),
                pl.BlockSpec((Cout, 1), lambda b, j: (0, 0)),
            ],
            out_specs=[pl.BlockSpec((1, Cout, lblk), lambda b, j: (b, 0, j)),
                       pl.BlockSpec((1, Cout, lblk), lambda b, j: (b, 0, j))],
        ),
        compiler_params=pltpu.CompilerParams(
            dimension_semantics=("parallel", "parallel")),
        cost_estimate=cost,
    )(x_flat, x_taps, w1, b1_col, wt, bt_col)


# ---------------------------------------------------------------------------
# kernel 2: Chebyshev graph mixing   u[b, c*K + k] = Ls[k] @ x1[b, c]
#   One grid step per batch; one stacked-basis matmul (K*N, N)@(N, T) per
#   channel; results sliced back into the (c*K + k) channel layout with
#   static sublane-aligned slices (no relayout).
# ---------------------------------------------------------------------------
def _cheby_mix_kernel(x1_ref, ls_ref, u_ref):
    # x1_ref: (1, C, N, T)  ls_ref: (K*N, N)  u_ref: (1, C*K, N, T)
    C = x1_ref.shape[1]
    KN, N = ls_ref.shape
    K = KN // N
    ls = ls_ref[...]
    for c in range(C):                       # C is small & static -> unrolled
        prod = jnp.dot(ls, x1_ref[0, c, :, :],
                       preferred_element_type=jnp.float32)     # (K*N, T)
        for k in range(K):
            u_ref[0, c * K + k, :, :] = (
                prod[k * N:(k + 1) * N, :].astype(u_ref.dtype))


def _cheby_mix(x1_4d, ls_flat):
    B, C, N, T = x1_4d.shape
    KN = ls_flat.shape[0]
    K = KN // N
    cost = pl.CostEstimate(
        flops=2 * B * C * KN * N * T,
        transcendentals=0,
        bytes_accessed=4 * (B * C * N * T + KN * N + B * C * K * N * T))
    return pl.pallas_call(
        _cheby_mix_kernel,
        out_shape=jax.ShapeDtypeStruct((B, C * K, N, T), x1_4d.dtype),
        grid_spec=pl.GridSpec(
            grid=(B,),
            in_specs=[
                pl.BlockSpec((1, C, N, T), lambda b: (b, 0, 0, 0)),
                pl.BlockSpec((KN, N), lambda b: (0, 0)),
            ],
            out_specs=pl.BlockSpec((1, C * K, N, T), lambda b: (b, 0, 0, 0)),
        ),
        compiler_params=pltpu.CompilerParams(
            dimension_semantics=("parallel",)),
        cost_estimate=cost,
    )(x1_4d, ls_flat)


# ---------------------------------------------------------------------------
# kernel 3: gcn 1x1 conv fused with split + gating
#   filter = Wf @ u + bf ; gate = Wg @ u + bg
#   out    = (filter + x_input1) * sigmoid(gate)
# ---------------------------------------------------------------------------
def _gcn_gate_kernel(u_ref, xin_ref, wf_ref, wg_ref, bf_ref, bg_ref, o_ref):
    u = u_ref[0]                              # (C*K, Lblk)
    filt = jnp.dot(wf_ref[...], u, preferred_element_type=jnp.float32) + bf_ref[...]
    gate = jnp.dot(wg_ref[...], u, preferred_element_type=jnp.float32) + bg_ref[...]
    x_in = xin_ref[0].astype(jnp.float32)
    sig = pl.reciprocal(1.0 + jnp.exp(-gate), approx=True)   # sigmoid on the EUP
    o_ref[0] = ((filt + x_in) * sig).astype(o_ref.dtype)


def _gcn_gate(u_flat, x_input1, wf, wg, bf_col, bg_col):
    B, CK, L = u_flat.shape
    C = wf.shape[0]
    lblk = _pick_lane_block(L)
    cost = pl.CostEstimate(
        flops=4 * B * C * CK * L + 3 * B * C * L,
        transcendentals=B * C * L,
        bytes_accessed=4 * (B * CK * L + 2 * B * C * L + 2 * C * CK + 2 * C))
    return pl.pallas_call(
        _gcn_gate_kernel,
        out_shape=jax.ShapeDtypeStruct((B, C, L), u_flat.dtype),
        grid_spec=pl.GridSpec(
            grid=(B, L // lblk),
            in_specs=[
                pl.BlockSpec((1, CK, lblk), lambda b, j: (b, 0, j)),
                pl.BlockSpec((1, C, lblk), lambda b, j: (b, 0, j)),
                pl.BlockSpec((C, CK), lambda b, j: (0, 0)),
                pl.BlockSpec((C, CK), lambda b, j: (0, 0)),
                pl.BlockSpec((C, 1), lambda b, j: (0, 0)),
                pl.BlockSpec((C, 1), lambda b, j: (0, 0)),
            ],
            out_specs=pl.BlockSpec((1, C, lblk), lambda b, j: (b, 0, j)),
        ),
        compiler_params=pltpu.CompilerParams(
            dimension_semantics=("parallel", "parallel")),
        cost_estimate=cost,
    )(u_flat, x_input1, wf, wg, bf_col, bg_col)


# ---------------------------------------------------------------------------
# forward pass
# ---------------------------------------------------------------------------
def st_block_6_forward(x, supports, params):
    """Pallas forward matching ST_BLOCK_6.forward (x: [B, C_in, N, T])."""
    B, Cin, N, T = x.shape
    Wt, bt = params["conv1_w"], params["conv1_b"]      # (Cout, Cin, 1, Kt), (Cout,)
    W1, b1 = params["conv_1_w"], params["conv_1_b"]    # (Cout, Cin, 1, 1),  (Cout,)
    Wg, bg = params["gcn_w"], params["gcn_b"]          # (2*Cout, K*Cout, 1, 1), (2*Cout,)
    Cout, Kt = Wt.shape[0], Wt.shape[-1]
    K = Wg.shape[1] // Cout
    L = N * T
    # The module hard-codes padding=(0,1); the residual add only shape-checks for Kt==3.
    assert Kt == 3, "ST_BLOCK_6 forward is only shape-consistent for Kt == 3"

    # TODO(synk): the Chebyshev-basis recurrence (tiny K x N x N) and the im2col
    # tap-stacking/padding below are left to plain XLA in the wrapper; their cost
    # is negligible next to the Pallas matmul kernels.
    Ls = _chebyshev_stack(supports, K)                  # (K, N, N)
    ls_flat = Ls.reshape(K * N, N)

    # conv_1 / conv1 inputs as lane-dense channel matmuls over the N*T axis.
    x_flat = x.reshape(B, Cin, L)
    x_pad = jnp.pad(x, ((0, 0), (0, 0), (0, 0), (1, 1)))
    taps = jnp.stack([x_pad[..., kt:kt + T] for kt in range(Kt)], axis=2)
    x_taps = taps.reshape(B, Cin * Kt, L)               # channel order ci*Kt + kt

    x_input1, x1 = _input_convs(
        x_flat, x_taps,
        W1.reshape(Cout, Cin), b1.reshape(Cout, 1),
        Wt.reshape(Cout, Cin * Kt), bt.reshape(Cout, 1))

    # cheby_conv graph mixing: u[b, c*K + k] = Ls[k] @ x1[b, c]
    u = _cheby_mix(x1.reshape(B, Cout, N, T), ls_flat)  # (B, Cout*K, N, T)

    # gcn 1x1 conv + split + sigmoid gating, fused (x2 never hits HBM).
    Wg2 = Wg.reshape(2 * Cout, Cout * K)
    out = _gcn_gate(u.reshape(B, Cout * K, L), x_input1,
                    Wg2[:Cout], Wg2[Cout:],
                    bg[:Cout].reshape(Cout, 1), bg[Cout:].reshape(Cout, 1))
    return out.reshape(B, Cout, N, T)


# ---------------------------------------------------------------------------
# parameter init (PyTorch Conv2d default init) and plain-JAX reference
# ---------------------------------------------------------------------------
def init_st_block_6_params(key, c_in, c_out, K, Kt):
    def conv_init(k, shape):
        kw, kb = jax.random.split(k)
        fan_in = shape[1] * shape[2] * shape[3]
        bound = 1.0 / (fan_in ** 0.5)
        w = jax.random.uniform(kw, shape, jnp.float32, -bound, bound)
        b = jax.random.uniform(kb, (shape[0],), jnp.float32, -bound, bound)
        return w, b

    k1, k2, k3 = jax.random.split(key, 3)
    Wt, bt = conv_init(k1, (c_out, c_in, 1, Kt))
    W1, b1 = conv_init(k2, (c_out, c_in, 1, 1))
    Wg, bg = conv_init(k3, (2 * c_out, K * c_out, 1, 1))
    return {"conv1_w": Wt, "conv1_b": bt,
            "conv_1_w": W1, "conv_1_b": b1,
            "gcn_w": Wg, "gcn_b": bg}


def st_block_6_reference(x, supports, params):
    """Plain-JAX replica of the PyTorch forward (for verification)."""
    hp = jax.lax.Precision.HIGHEST
    Wt, bt = params["conv1_w"], params["conv1_b"]
    W1, b1 = params["conv_1_w"], params["conv_1_b"]
    Wg, bg = params["gcn_w"], params["gcn_b"]
    B, Cin, N, T = x.shape
    Cout, Kt = Wt.shape[0], Wt.shape[-1]
    K = Wg.shape[1] // Cout

    x_input1 = jnp.einsum("oc,bcnt->bont", W1[:, :, 0, 0], x,
                          precision=hp) + b1[None, :, None, None]
    x_pad = jnp.pad(x, ((0, 0), (0, 0), (0, 0), (1, 1)))
    x1 = sum(jnp.einsum("oc,bcnt->bont", Wt[:, :, 0, kt], x_pad[..., kt:kt + T],
                        precision=hp) for kt in range(Kt))
    x1 = x1 + bt[None, :, None, None]

    Ls = _chebyshev_stack(supports, K)
    Lap = jnp.transpose(Ls, (0, 2, 1))
    u = jnp.einsum("bcnl,knq->bckql", x1, Lap, precision=hp)
    u = u.reshape(B, Cout * K, N, T)
    x2 = jnp.einsum("oc,bcnt->bont", Wg[:, :, 0, 0], u,
                    precision=hp) + bg[None, :, None, None]
    filt, gate = x2[:, :Cout], x2[:, Cout:]
    return (filt + x_input1) * (1.0 / (1.0 + jnp.exp(-gate)))


if __name__ == "__main__":
    key = jax.random.PRNGKey(0)
    k_x, k_a, k_p = jax.random.split(key, 3)

    # Small shapes: batch=2, c_in=4, c_out=8, num_nodes=16, tem_size=16, K=Kt=3.
    B, c_in, c_out, N, T, K, Kt = 2, 4, 8, 16, 16, 3, 3

    x = jax.random.normal(k_x, (B, c_in, N, T), jnp.float32)
    adj = jax.random.uniform(k_a, (N, N), jnp.float32)
    adj = adj / jnp.sum(adj, axis=1, keepdims=True)       # row-normalized support

    params = init_st_block_6_params(k_p, c_in, c_out, K, Kt)

    out = st_block_6_forward(x, adj, params)
    out = jax.block_until_ready(out)

    ref = st_block_6_reference(x, adj, params)
    assert out.shape == (B, c_out, N, T)
    assert bool(jnp.allclose(out, ref, atol=2e-2, rtol=2e-2)), (
        "max abs diff = %f" % float(jnp.max(jnp.abs(out - ref))))

    print("KERNEL_OK")
</pallas_src>

<mosaic_0001>
module attributes {stable_mosaic.version = 11 : i64} {
  func.func @_input_convs_kernel(%arg0: i32, %arg1: i32, %arg2: memref<1x4x256xf32, #tpu.memory_space<vmem>>, %arg3: memref<1x12x256xf32, #tpu.memory_space<vmem>>, %arg4: memref<8x4xf32, #tpu.memory_space<vmem>>, %arg5: memref<8x1xf32, #tpu.memory_space<vmem>>, %arg6: memref<8x12xf32, #tpu.memory_space<vmem>>, %arg7: memref<8x1xf32, #tpu.memory_space<vmem>>, %arg8: memref<1x8x256xf32, #tpu.memory_space<vmem>>, %arg9: memref<1x8x256xf32, #tpu.memory_space<vmem>>) attributes {dimension_semantics = [#tpu.dimension_semantics<parallel>, #tpu.dimension_semantics<parallel>], iteration_bounds = array<i64: 2, 1>, scalar_prefetch = 0 : i64, scratch_operands = 0 : i64, tpu.core_type = #tpu.core_type<tc>, window_params = [{transform_indices = @transform_0, window_bounds = array<i64: 1, 4, 256>}, {transform_indices = @transform_1, window_bounds = array<i64: 1, 12, 256>}, {pipeline_mode = #tpu.pipeline_mode<synchronous>, transform_indices = @transform_2, window_bounds = array<i64: 8, 4>}, {pipeline_mode = #tpu.pipeline_mode<synchronous>, transform_indices = @transform_3, window_bounds = array<i64: 8, 1>}, {pipeline_mode = #tpu.pipeline_mode<synchronous>, transform_indices = @transform_4, window_bounds = array<i64: 8, 12>}, {pipeline_mode = #tpu.pipeline_mode<synchronous>, transform_indices = @transform_5, window_bounds = array<i64: 8, 1>}, {transform_indices = @transform_6, window_bounds = array<i64: 1, 8, 256>}, {transform_indices = @transform_7, window_bounds = array<i64: 1, 8, 256>}]} {
    %c0 = arith.constant 0 : index
    %c0_0 = arith.constant 0 : index
    %0 = vector.load %arg4[%c0, %c0_0] : memref<8x4xf32, #tpu.memory_space<vmem>>, vector<8x4xf32>
    %c0_1 = arith.constant 0 : index
    %c0_2 = arith.constant 0 : index
    %c0_3 = arith.constant 0 : index
    %1 = vector.load %arg2[%c0_1, %c0_2, %c0_3] : memref<1x4x256xf32, #tpu.memory_space<vmem>>, vector<1x4x256xf32>
    %2 = vector.shape_cast %1 : vector<1x4x256xf32> to vector<4x256xf32>
    %cst = arith.constant dense<0.000000e+00> : vector<8x256xf32>
    %3 = tpu.matmul %0, %2, %cst {dimension_numbers = #tpu.dot_dimension_numbers<[1], [0], [0], [1], [0, 0, 1, 1], [], []>} : vector<8x4xf32>, vector<4x256xf32>, vector<8x256xf32> -> vector<8x256xf32>
    %c0_4 = arith.constant 0 : index
    %c0_5 = arith.constant 0 : index
    %4 = vector.load %arg5[%c0_4, %c0_5] : memref<8x1xf32, #tpu.memory_space<vmem>>, vector<8x1xf32>
    %5 = vector.broadcast %4 : vector<8x1xf32> to vector<8x256xf32>
    %6 = arith.addf %3, %5 : vector<8x256xf32>
    %c0_6 = arith.constant 0 : index
    %c0_7 = arith.constant 0 : index
    %c0_8 = arith.constant 0 : index
    %7 = vector.load %arg8[%c0_6, %c0_7, %c0_8] : memref<1x8x256xf32, #tpu.memory_space<vmem>>, vector<1x8x256xf32>
    %8 = vector.shape_cast %7 : vector<1x8x256xf32> to vector<8x256xf32>
    %9 = vector.shape_cast %6 : vector<8x256xf32> to vector<1x8x256xf32>
    tpu.vector_store %arg8[%c0_6, %c0_7, %c0_8], %9 {strides = array<i32>} : memref<1x8x256xf32, #tpu.memory_space<vmem>>, vector<1x8x256xf32>,
    %c0_9 = arith.constant 0 : index
    %c0_10 = arith.constant 0 : index
    %10 = vector.load %arg6[%c0_9, %c0_10] : memref<8x12xf32, #tpu.memory_space<vmem>>, vector<8x12xf32>
    %c0_11 = arith.constant 0 : index
    %c0_12 = arith.constant 0 : index
    %c0_13 = arith.constant 0 : index
    %11 = vector.load %arg3[%c0_11, %c0_12, %c0_13] : memref<1x12x256xf32, #tpu.memory_space<vmem>>, vector<1x12x256xf32>
    %12 = vector.shape_cast %11 : vector<1x12x256xf32> to vector<12x256xf32>
    %cst_14 = arith.constant dense<0.000000e+00> : vector<8x256xf32>
    %13 = tpu.matmul %10, %12, %cst_14 {dimension_numbers = #tpu.dot_dimension_numbers<[1], [0], [0], [1], [0, 0, 1, 1], [], []>} : vector<8x12xf32>, vector<12x256xf32>, vector<8x256xf32> -> vector<8x256xf32>
    %c0_15 = arith.constant 0 : index
    %c0_16 = arith.constant 0 : index
    %14 = vector.load %arg7[%c0_15, %c0_16] : memref<8x1xf32, #tpu.memory_space<vmem>>, vector<8x1xf32>
    %15 = vector.broadcast %14 : vector<8x1xf32> to vector<8x256xf32>
    %16 = arith.addf %13, %15 : vector<8x256xf32>
    %c0_17 = arith.constant 0 : index
    %c0_18 = arith.constant 0 : index
    %c0_19 = arith.constant 0 : index
    %17 = vector.load %arg9[%c0_17, %c0_18, %c0_19] : memref<1x8x256xf32, #tpu.memory_space<vmem>>, vector<1x8x256xf32>
    %18 = vector.shape_cast %17 : vector<1x8x256xf32> to vector<8x256xf32>
    %19 = vector.shape_cast %16 : vector<8x256xf32> to vector<1x8x256xf32>
    tpu.vector_store %arg9[%c0_17, %c0_18, %c0_19], %19 {strides = array<i32>} : memref<1x8x256xf32, #tpu.memory_space<vmem>>, vector<1x8x256xf32>,
    return
  }
  func.func @transform_0(%arg0: i32, %arg1: i32) -> (i32, i32, i32) {
    %c0_i32 = arith.constant 0 : i32
    %c0_i32_0 = arith.constant 0 : i32
    return %arg0, %c0_i32, %arg1 : i32, i32, i32
  }
  func.func @transform_1(%arg0: i32, %arg1: i32) -> (i32, i32, i32) {
    %c0_i32 = arith.constant 0 : i32
    %c0_i32_0 = arith.constant 0 : i32
    return %arg0, %c0_i32, %arg1 : i32, i32, i32
  }
  func.func @transform_2(%arg0: i32, %arg1: i32) -> (i32, i32) {
    %c0_i32 = arith.constant 0 : i32
    %c0_i32_0 = arith.constant 0 : i32
    %c0_i32_1 = arith.constant 0 : i32
    return %c0_i32, %c0_i32_0 : i32, i32
  }
  func.func @transform_3(%arg0: i32, %arg1: i32) -> (i32, i32) {
    %c0_i32 = arith.constant 0 : i32
    %c0_i32_0 = arith.constant 0 : i32
    %c0_i32_1 = arith.constant 0 : i32
    return %c0_i32, %c0_i32_0 : i32, i32
  }
  func.func @transform_4(%arg0: i32, %arg1: i32) -> (i32, i32) {
    %c0_i32 = arith.constant 0 : i32
    %c0_i32_0 = arith.constant 0 : i32
    %c0_i32_1 = arith.constant 0 : i32
    return %c0_i32, %c0_i32_0 : i32, i32
  }
  func.func @transform_5(%arg0: i32, %arg1: i32) -> (i32, i32) {
    %c0_i32 = arith.constant 0 : i32
    %c0_i32_0 = arith.constant 0 : i32
    %c0_i32_1 = arith.constant 0 : i32
    return %c0_i32, %c0_i32_0 : i32, i32
  }
  func.func @transform_6(%arg0: i32, %arg1: i32) -> (i32, i32, i32) {
    %c0_i32 = arith.constant 0 : i32
    %c0_i32_0 = arith.constant 0 : i32
    return %arg0, %c0_i32, %arg1 : i32, i32, i32
  }
  func.func @transform_7(%arg0: i32, %arg1: i32) -> (i32, i32, i32) {
    %c0_i32 = arith.constant 0 : i32
    %c0_i32_0 = arith.constant 0 : i32
    return %arg0, %c0_i32, %arg1 : i32, i32, i32
  }
}

</mosaic_0001>

<llo_original>
// kernel: tpu_custom_call.1
$region0: #{tpu_custom_call.1}
  #allocation0 [shape = 'u32[]', space=smem, size = 0x4, offset = 0x4, fixed_abs, tag = 'smem constant byte address 0x4 - core index']
  #allocation1 [shape = 'u32[144,128]{1,0:T(1,128)}', space=vmem, size = 0x12000, scoped, tag = 'internal scratch']
  %s0 = inlined_call_operand.vmem [shape: f32[2,4,256], index: 0, kind: input, shape index: {}]
  %s1 = inlined_call_operand.vmem [shape: f32[2,12,256], index: 1, kind: input, shape index: {}]
  %s2 = inlined_call_operand.vmem [shape: f32[8,4], index: 2, kind: input, shape index: {}]
  %s3 = inlined_call_operand.vmem [shape: f32[8,1], index: 3, kind: input, shape index: {}]
  %s4 = inlined_call_operand.vmem [shape: f32[8,12], index: 4, kind: input, shape index: {}]
  %s5 = inlined_call_operand.vmem [shape: f32[8,1], index: 5, kind: input, shape index: {}]
  %s6 = inlined_call_operand.hbm [shape: f32[2,8,256], index: 6, kind: output, shape index: {0}]
  %s7 = inlined_call_operand.hbm [shape: f32[2,8,256], index: 7, kind: output, shape index: {1}]
  %8 = xla_tuple %s6, %s7
  %s9 = sld [smem:[#allocation0]]
  $region65: #{tpu_custom_call.1} parent=0
    _
  %s11 = ssub.s32 1, %s9
  %s12 = scalar_select 0, %s11, %s9
  $region1: #{tpu_custom_call.1} parent=0
    #allocation2 [shape = 'u8[16384]{0}', space=vmem, size = 0x4000, scoped, tag = 'output window, operand 0']
    #allocation3 [shape = 's32[2]{0}', space=sflag, size = 0x8, scoped, tag = 'scoped memory for tpu_custom_call.1']
    #allocation4 [shape = 'u8[16384]{0}', space=vmem, size = 0x4000, scoped, tag = 'output window, operand 1']
    #allocation5 [shape = 's32[2]{0}', space=sflag, size = 0x8, scoped, tag = 'scoped memory for tpu_custom_call.1']
    %13 = vsyncpa [#allocation3], 0
    %s14 = scalar_lea.sflag [#allocation3], 1
    %15 = vsyncpa %s14, 0
    %16 = vsyncpa [#allocation5], 0
    %s17 = scalar_lea.sflag [#allocation5], 1
    %18 = vsyncpa %s17, 0
    loop: start=0, step=1, limit=4
    $region2: #{tpu_custom_call.1} parent=1 // loop_pre_header
      _
    $region3: #{tpu_custom_call.1} parent=1 // loop_header
      %s20 = sphi 0, %s24
      %p21 = scmp.ge.s32.totalorder %s20, 4
      %s27 = sphi 0, %s39
      %s28 = sphi 0, %s35
      %s29 = sphi 0, %s27
      %s30 = sphi 0, %s28
      %s31 = sphi 0, %s29
      %s32 = sphi 0, %s30
      %s44 = sphi 0, %s46
      %s47 = sphi 0, %s44
      %s48 = sphi 0, %s47
      %s64 = sphi 0, %s48
      %s72 = sphi 0, %s74
      %s75 = sphi 0, %s72
      %s76 = sphi 0, %s75
      %s92 = sphi 0, %s76
      %s96 = sphi 0, %s96
      %s98 = sphi 0, %s96
      %s99 = sphi 0, %s98
      %s113 = sphi 0, %s99
      %s117 = sphi 0, %s117
      %s119 = sphi 0, %s117
      %s120 = sphi 0, %s119
      %s134 = sphi 0, %s120
      %s138 = sphi 0, %s138
      %s140 = sphi 0, %s138
      %s141 = sphi 0, %s140
      %s155 = sphi 0, %s141
      %s159 = sphi 0, %s159
      %s161 = sphi 0, %s159
      %s162 = sphi 0, %s161
      %s176 = sphi 0, %s162
      %s184 = sphi 0, %s186
      %s187 = sphi 0, %s184
      %s188 = sphi 0, %s187
      %s204 = sphi 0, %s188
      %s212 = sphi 0, %s214
      %s215 = sphi 0, %s212
      %s216 = sphi 0, %s215
      %s232 = sphi 0, %s216
    $region4: #{tpu_custom_call.1} parent=1 // loop_header_branch
      %23 = sbr.rel (%p21) target = $region8
    $region5: #{tpu_custom_call.1} parent=1 // loop_body
      %s25 = ssub.s32 %s20, 1
      %s26 = ssub.s32 %s20, 2
      %s33 = sadd.s32 1, %s28
      %p34 = scmp.ge.s32.totalorder %s33, 1
      %s35 = scalar_select %p34, 0, %s33
      %s36 = sadd.s32 1, %s27
      %s37 = scalar_select %p34, %s36, %s27
      %p38 = scmp.ge.s32.totalorder %s37, 2
      %s39 = scalar_select %p38, 0, %s37
      %s40 = ssub.s32 %s27, %s39
      %s41 = ssub.s32 %s28, %s35
      %s42 = sor.u32 %s40, %s41
      %p43 = scmp.eq.s32.totalorder %s42, 0
      %s45 = sadd.s32 %s44, 1
      %s46 = scalar_select %p43, %s44, %s45
      %p49 = pneg %p43
      %p50 = scmp.eq.s32.totalorder %s20, 1
      %p51 = por %p49, %p50
      %p52 = scmp.ne.s32.totalorder %s44, %s47
      %p53 = scmp.eq.s32.totalorder %s20, 0
      %p54 = por %p52, %p53
      %p55 = scmp.ne.s32.totalorder %s44, %s47
      %p56 = scmp.eq.s32.totalorder %s25, 1
      %p57 = por %p55, %p56
      %p58 = scmp.ne.s32.totalorder %s47, %s48
      %p59 = scmp.eq.s32.totalorder %s25, 0
      %p60 = por %p58, %p59
      %p61 = scmp.ne.s32.totalorder %s47, %s48
      %p62 = scmp.eq.s32.totalorder %s26, 1
      %p63 = por %p61, %p62
      %p65 = scmp.ne.s32.totalorder %s48, %s64
      %p66 = scmp.eq.s32.totalorder %s26, 0
      %p67 = por %p65, %p66
      %s68 = ssub.s32 %s27, %s39
      %s69 = ssub.s32 %s28, %s35
      %s70 = sor.u32 %s68, %s69
      %p71 = scmp.eq.s32.totalorder %s70, 0
      %s73 = sadd.s32 %s72, 1
      %s74 = scalar_select %p71, %s72, %s73
      %p77 = pneg %p71
      %p78 = scmp.eq.s32.totalorder %s20, 1
      %p79 = por %p77, %p78
      %p80 = scmp.ne.s32.totalorder %s72, %s75
      %p81 = scmp.eq.s32.totalorder %s20, 0
      %p82 = por %p80, %p81
      %p83 = scmp.ne.s32.totalorder %s72, %s75
      %p84 = scmp.eq.s32.totalorder %s25, 1
      %p85 = por %p83, %p84
      %p86 = scmp.ne.s32.totalorder %s75, %s76
      %p87 = scmp.eq.s32.totalorder %s25, 0
      %p88 = por %p86, %p87
      %p89 = scmp.ne.s32.totalorder %s75, %s76
      %p90 = scmp.eq.s32.totalorder %s26, 1
      %p91 = por %p89, %p90
      %p93 = scmp.ne.s32.totalorder %s76, %s92
      %p94 = scmp.eq.s32.totalorder %s26, 0
      %p95 = por %p93, %p94
      %s97 = sadd.s32 %s96, 1
      %p100 = scmp.eq.s32.totalorder %s20, 1
      %p101 = scmp.ne.s32.totalorder %s96, %s98
      %p102 = scmp.eq.s32.totalorder %s20, 0
      %p103 = por %p101, %p102
      %p104 = scmp.ne.s32.totalorder %s96, %s98
      %p105 = scmp.eq.s32.totalorder %s25, 1
      %p106 = por %p104, %p105
      %p107 = scmp.ne.s32.totalorder %s98, %s99
      %p108 = scmp.eq.s32.totalorder %s25, 0
      %p109 = por %p107, %p108
      %p110 = scmp.ne.s32.totalorder %s98, %s99
      %p111 = scmp.eq.s32.totalorder %s26, 1
      %p112 = por %p110, %p111
      %p114 = scmp.ne.s32.totalorder %s99, %s113
      %p115 = scmp.eq.s32.totalorder %s26, 0
      %p116 = por %p114, %p115
      %s118 = sadd.s32 %s117, 1
      %p121 = scmp.eq.s32.totalorder %s20, 1
      %p122 = scmp.ne.s32.totalorder %s117, %s119
      %p123 = scmp.eq.s32.totalorder %s20, 0
      %p124 = por %p122, %p123
      %p125 = scmp.ne.s32.totalorder %s117, %s119
      %p126 = scmp.eq.s32.totalorder %s25, 1
      %p127 = por %p125, %p126
      %p128 = scmp.ne.s32.totalorder %s119, %s120
      %p129 = scmp.eq.s32.totalorder %s25, 0
      %p130 = por %p128, %p129
      %p131 = scmp.ne.s32.totalorder %s119, %s120
      %p132 = scmp.eq.s32.totalorder %s26, 1
      %p133 = por %p131, %p132
      %p135 = scmp.ne.s32.totalorder %s120, %s134
      %p136 = scmp.eq.s32.totalorder %s26, 0
      %p137 = por %p135, %p136
      %s139 = sadd.s32 %s138, 1
      %p142 = scmp.eq.s32.totalorder %s20, 1
      %p143 = scmp.ne.s32.totalorder %s138, %s140
      %p144 = scmp.eq.s32.totalorder %s20, 0
      %p145 = por %p143, %p144
      %p146 = scmp.ne.s32.totalorder %s138, %s140
      %p147 = scmp.eq.s32.totalorder %s25, 1
      %p148 = por %p146, %p147
      %p149 = scmp.ne.s32.totalorder %s140, %s141
      %p150 = scmp.eq.s32.totalorder %s25, 0
      %p151 = por %p149, %p150
      %p152 = scmp.ne.s32.totalorder %s140, %s141
      %p153 = scmp.eq.s32.totalorder %s26, 1
      %p154 = por %p152, %p153
      %p156 = scmp.ne.s32.totalorder %s141, %s155
      %p157 = scmp.eq.s32.totalorder %s26, 0
      %p158 = por %p156, %p157
      %s160 = sadd.s32 %s159, 1
      %p163 = scmp.eq.s32.totalorder %s20, 1
      %p164 = scmp.ne.s32.totalorder %s159, %s161
      %p165 = scmp.eq.s32.totalorder %s20, 0
      %p166 = por %p164, %p165
      %p167 = scmp.ne.s32.totalorder %s159, %s161
      %p168 = scmp.eq.s32.totalorder %s25, 1
      %p169 = por %p167, %p168
      %p170 = scmp.ne.s32.totalorder %s161, %s162
      %p171 = scmp.eq.s32.totalorder %s25, 0
      %p172 = por %p170, %p171
      %p173 = scmp.ne.s32.totalorder %s161, %s162
      %p174 = scmp.eq.s32.totalorder %s26, 1
      %p175 = por %p173, %p174
      %p177 = scmp.ne.s32.totalorder %s162, %s176
      %p178 = scmp.eq.s32.totalorder %s26, 0
      %p179 = por %p177, %p178
      %s180 = ssub.s32 %s27, %s39
      %s181 = ssub.s32 %s28, %s35
      %s182 = sor.u32 %s180, %s181
      %p183 = scmp.eq.s32.totalorder %s182, 0
      %s185 = sadd.s32 %s184, 1
      %s186 = scalar_select %p183, %s184, %s185
      %p189 = pneg %p183
      %p190 = scmp.eq.s32.totalorder %s20, 1
      %p191 = por %p189, %p190
      %p192 = scmp.ne.s32.totalorder %s184, %s187
      %p193 = scmp.eq.s32.totalorder %s20, 0
      %p194 = por %p192, %p193
      %p195 = scmp.ne.s32.totalorder %s184, %s187
      %p196 = scmp.eq.s32.totalorder %s25, 1
      %p197 = por %p195, %p196
      %p198 = scmp.ne.s32.totalorder %s187, %s188
      %p199 = scmp.eq.s32.totalorder %s25, 0
      %p200 = por %p198, %p199
      %p201 = scmp.ne.s32.totalorder %s187, %s188
      %p202 = scmp.eq.s32.totalorder %s26, 1
      %p203 = por %p201, %p202
      %p205 = scmp.ne.s32.totalorder %s188, %s204
      %p206 = scmp.eq.s32.totalorder %s26, 0
      %p207 = por %p205, %p206
      %s208 = ssub.s32 %s27, %s39
      %s209 = ssub.s32 %s28, %s35
      %s210 = sor.u32 %s208, %s209
      %p211 = scmp.eq.s32.totalorder %s210, 0
      %s213 = sadd.s32 %s212, 1
      %s214 = scalar_select %p211, %s212, %s213
      %p217 = pneg %p211
      %p218 = scmp.eq.s32.totalorder %s20, 1
      %p219 = por %p217, %p218
      %p220 = scmp.ne.s32.totalorder %s212, %s215
      %p221 = scmp.eq.s32.totalorder %s20, 0
      %p222 = por %p220, %p221
      %p223 = scmp.ne.s32.totalorder %s212, %s215
      %p224 = scmp.eq.s32.totalorder %s25, 1
      %p225 = por %p223, %p224
      %p226 = scmp.ne.s32.totalorder %s215, %s216
      %p227 = scmp.eq.s32.totalorder %s25, 0
      %p228 = por %p226, %p227
      %p229 = scmp.ne.s32.totalorder %s215, %s216
      %p230 = scmp.eq.s32.totalorder %s26, 1
      %p231 = por %p229, %p230
      %p233 = scmp.ne.s32.totalorder %s216, %s232
      %p234 = scmp.eq.s32.totalorder %s26, 0
      %p235 = por %p233, %p234
      %p236 = scmp.le.s32.totalorder 1, %s20
      %p237 = scmp.lt.s32.totalorder %s20, 3
      %p238 = pnand %p236, %p237
      %p239 = pneg %p238
      // Predicated region
      $region9: #{tpu_custom_call.1} parent=5 // pred_check
        _
      $region10: #{tpu_custom_call.1} parent=5 // pred_check_branch
        %241 = sbr.rel (%p238) target = $region12
      $region11: #{tpu_custom_call.1} parent=5 // pred_region
        %s242 = ssub.s32 %s20, 1
        // Predicated region
        $region13: #{tpu_custom_call.1} parent=11 // pred_check
          %p243 = pneg %p109
        $region14: #{tpu_custom_call.1} parent=11 // pred_check_branch
          %245 = sbr.rel (%p243) target = $region16
        $region15: #{tpu_custom_call.1} parent=11 // pred_region
          _
        $region16: #{tpu_custom_call.1} parent=11 // pred_fallthru
          _
        // Predicated region
        $region17: #{tpu_custom_call.1} parent=11 // pred_check
          %p246 = pneg %p130
        $region18: #{tpu_custom_call.1} parent=11 // pred_check_branch
          %248 = sbr.rel (%p246) target = $region20
        $region19: #{tpu_custom_call.1} parent=11 // pred_region
          _
        $region20: #{tpu_custom_call.1} parent=11 // pred_fallthru
          _
        // Predicated region
        $region21: #{tpu_custom_call.1} parent=11 // pred_check
          %p249 = pneg %p151
        $region22: #{tpu_custom_call.1} parent=11 // pred_check_branch
          %251 = sbr.rel (%p249) target = $region24
        $region23: #{tpu_custom_call.1} parent=11 // pred_region
          _
        $region24: #{tpu_custom_call.1} parent=11 // pred_fallthru
          _
        // Predicated region
        $region25: #{tpu_custom_call.1} parent=11 // pred_check
          %p252 = pneg %p172
        $region26: #{tpu_custom_call.1} parent=11 // pred_check_branch
          %254 = sbr.rel (%p252) target = $region28
        $region27: #{tpu_custom_call.1} parent=11 // pred_region
          _
        $region28: #{tpu_custom_call.1} parent=11 // pred_fallthru
          _
      $region12: #{tpu_custom_call.1} parent=5 // pred_fallthru
        _
      %p255 = scmp.lt.s32.totalorder %s20, 2
      // Predicated region
      $region29: #{tpu_custom_call.1} parent=5 // pred_check
        %p256 = pneg %p255
      $region30: #{tpu_custom_call.1} parent=5 // pred_check_branch
        %258 = sbr.rel (%p256) target = $region32
      $region31: #{tpu_custom_call.1} parent=5 // pred_region
        // Predicated region
        $region33: #{tpu_custom_call.1} parent=31 // pred_check
          %p259 = pneg %p54
        $region34: #{tpu_custom_call.1} parent=31 // pred_check_branch
          %261 = sbr.rel (%p259) target = $region36
        $region35: #{tpu_custom_call.1} parent=31 // pred_region
          %s262 = smul.u32 2, %s28
          %p263 = scmp.lt.s32.totalorder %s27, 1
          %s264 = scalar_select %p263, %s27, 1
          %p265 = scmp.lt.s32.totalorder %s262, 1
          %s266 = scalar_select %p265, %s262, 1
          %s267 = smul.addr %s264, 2
          %s268 = sadd.s32 %s266, %s267
          %s269 = smul.addr %s268, 4
          %s270 = scalar_lea.vmem %s0, %s269
          %s271 = smul.u32 2, %s28
        $region36: #{tpu_custom_call.1} parent=31 // pred_fallthru
          _
        // Predicated region
        $region37: #{tpu_custom_call.1} parent=31 // pred_check
          %p272 = pneg %p82
        $region38: #{tpu_custom_call.1} parent=31 // pred_check_branch
          %274 = sbr.rel (%p272) target = $region40
        $region39: #{tpu_custom_call.1} parent=31 // pred_region
          %s275 = smul.u32 2, %s28
          %p276 = scmp.lt.s32.totalorder %s27, 1
          %s277 = scalar_select %p276, %s27, 1
          %p278 = scmp.lt.s32.totalorder %s275, 1
          %s279 = scalar_select %p278, %s275, 1
          %s280 = smul.addr %s277, 4
          %s281 = sadd.s32 %s279, %s280
          %s282 = smul.addr %s281, 8
          %s283 = scalar_lea.vmem %s1, %s282
          %s284 = smul.u32 2, %s28
        $region40: #{tpu_custom_call.1} parent=31 // pred_fallthru
          _
      $region32: #{tpu_custom_call.1} parent=5 // pred_fallthru
        _
      %p285 = scmp.le.s32.totalorder 1, %s20
      %p286 = scmp.lt.s32.totalorder %s20, 3
      %p287 = pnand %p285, %p286
      %p288 = pneg %p287
      // Predicated region
      $region41: #{tpu_custom_call.1} parent=5 // pred_check
        _
      $region42: #{tpu_custom_call.1} parent=5 // pred_check_branch
        %290 = sbr.rel (%p287) target = $region44
      $region43: #{tpu_custom_call.1} parent=5 // pred_region
        %s291 = ssub.s32 %s20, 1
        %s292 = smul.u32 2, %s30
        %p293 = scmp.lt.s32.totalorder %s29, 1
        %s294 = scalar_select %p293, %s29, 1
        %p295 = scmp.lt.s32.totalorder %s292, 1
        %s296 = scalar_select %p295, %s292, 1
        %s297 = smul.addr %s294, 2
        %s298 = sadd.s32 %s296, %s297
        %s299 = smul.addr %s298, 4
        %s300 = scalar_lea.vmem %s0, %s299
        %p301 = pneg %p60
        %p302 = pneg %p57
        %s303 = smul.u32 2, %s30
        %p304 = scmp.lt.s32.totalorder %s29, 1
        %s305 = scalar_select %p304, %s29, 1
        %p306 = scmp.lt.s32.totalorder %s303, 1
        %s307 = scalar_select %p306, %s303, 1
        %s308 = smul.addr %s305, 4
        %s309 = sadd.s32 %s307, %s308
        %s310 = smul.addr %s309, 8
        %s311 = scalar_lea.vmem %s1, %s310
        %p312 = pneg %p88
        %p313 = pneg %p85
        %p314 = pneg %p109
        %p315 = pneg %p106
        %p316 = pneg %p130
        %p317 = pneg %p127
        %p318 = pneg %p151
        %p319 = pneg %p148
        %p320 = pneg %p172
        %p321 = pneg %p169
        %p322 = pneg %p200
        %p323 = pneg %p197
        %s324 = sand.u32 %s187, 1
        %s325 = scalar_lea.sflag [#allocation3], %s324
        %s326 = sand.u32 %s187, 1
        %s327 = smul.addr %s326, 16
        %s328 = scalar_lea.vmem [#allocation2], %s327
        %p329 = pneg %p228
        %p330 = pneg %p225
        %s331 = sand.u32 %s215, 1
        %s332 = scalar_lea.sflag [#allocation5], %s331
        %s333 = sand.u32 %s215, 1
        %s334 = smul.addr %s333, 16
        %s335 = scalar_lea.vmem [#allocation4], %s334
        %s336 = smul.u32 2, %s30
        %p337 = scmp.lt.s32.totalorder %s29, 1
        %s338 = scalar_select %p337, %s29, 1
        %p339 = scmp.lt.s32.totalorder %s336, 1
        %s340 = scalar_select %p339, %s336, 1
        %s341 = smul.addr %s338, 2
        %s342 = sadd.s32 %s340, %s341
        %s343 = smul.addr %s342, 4
        %s344 = scalar_lea.vmem %s0, %s343
        %s345 = smul.u32 2, %s30
        %s346 = smul.u32 2, %s30
        %p347 = scmp.lt.s32.totalorder %s29, 1
        %s348 = scalar_select %p347, %s29, 1
        %p349 = scmp.lt.s32.totalorder %s346, 1
        %s350 = scalar_select %p349, %s346, 1
        %s351 = smul.addr %s348, 4
        %s352 = sadd.s32 %s350, %s351
        %s353 = smul.addr %s352, 8
        %s354 = scalar_lea.vmem %s1, %s353
        %s355 = smul.u32 2, %s30
        %s356 = smul.u32 2, %s30
        %s357 = smul.u32 2, %s30
        %v358 = vld [vmem:[%s2] sm:$0xff]
        %v359 = vld [vmem:[%s344] sm:$0xff]
        %v360 = vld [vmem:[%s3] sm:$0xff]
        %362 = vset.pattern.permute.xlu0 0
        %363 = vperm.xlu0 %362, %v360
        %v364 = vpop.permute.xlu0 %363
        %v367 = vcombine.high %v359, %v359
        %vm368 = vcmask 31744
        %v370 = vsel %vm368, %v358, 0
        %vm372 = vcmask 1043456
        %v373 = vsel %vm372, %v359, 0
        %v375 = vsel %vm372, %v367, 0
        %377 = vmatprep.subr.mxu0 %v375
        %378 = vmatpush1.msra.mxu0 %v373
        %379 = vmatprep.subr.mxu0 0.0
        %380 = vmatpush1.msra.mxu0 0.0
        %381 = vmatprep.subr.mxu0 0.0
        %382 = vmatpush1.msra.mxu0 0.0
        %383 = vmatprep.subr.mxu0 0.0
        %384 = vmatpush1.msra.mxu0 0.0
        %385 = vmatprep.subr.mxu0 0.0
        %386 = vmatpush1.msra.mxu0 0.0
        %387 = vmatprep.subr.mxu0 0.0
        %388 = vmatpush1.msra.mxu0 0.0
        %389 = vmatprep.subr.mxu0 0.0
        %390 = vmatpush1.msra.mxu0 0.0
        %391 = vmatprep.subr.mxu0 0.0
        %392 = vmatpush1.msra.mxu0 0.0
        %393 = vmatprep.subr.mxu0 0.0
        %394 = vmatpush1.msra.mxu0 0.0
        %395 = vmatprep.subr.mxu0 0.0
        %396 = vmatpush1.msra.mxu0 0.0
        %397 = vmatprep.subr.mxu0 0.0
        %398 = vmatpush1.msra.mxu0 0.0
        %399 = vmatprep.subr.mxu0 0.0
        %400 = vmatpush1.msra.mxu0 0.0
        %401 = vmatprep.subr.mxu0 0.0
        %402 = vmatpush1.msra.mxu0 0.0
        %403 = vmatprep.subr.mxu0 0.0
        %404 = vmatpush1.msra.mxu0 0.0
        %405 = vmatprep.subr.mxu0 0.0
        %406 = vmatpush1.msra.mxu0 0.0
        %407 = vmatprep.subr.mxu0 0.0
        %408 = vmatpush1.msra.mxu0 0.0
        %409 = vmatprep.subr.mxu0 0.0
        %410 = vmatpush1.msra.mxu0 0.0
        %411 = vmatprep.subr.mxu0 0.0
        %412 = vmatpush1.msra.mxu0 0.0
        %413 = vmatprep.subr.mxu0 0.0
        %414 = vmatpush1.msra.mxu0 0.0
        %415 = vmatprep.subr.mxu0 0.0
        %416 = vmatpush1.msra.mxu0 0.0
        %417 = vmatprep.subr.mxu0 0.0
        %418 = vmatpush1.msra.mxu0 0.0
        %419 = vmatprep.subr.mxu0 0.0
        %420 = vmatpush1.msra.mxu0 0.0
        %421 = vmatprep.subr.mxu0 0.0
        %422 = vmatpush1.msra.mxu0 0.0
        %423 = vmatprep.subr.mxu0 0.0
        %424 = vmatpush1.msra.mxu0 0.0
        %425 = vmatprep.subr.mxu0 0.0
        %426 = vmatpush1.msra.mxu0 0.0
        %427 = vmatprep.subr.mxu0 0.0
        %428 = vmatpush1.msra.mxu0 0.0
        %429 = vmatprep.subr.mxu0 0.0
        %430 = vmatpush1.msra.mxu0 0.0
        %431 = vmatprep.subr.mxu0 0.0
        %432 = vmatpush1.msra.mxu0 0.0
        %433 = vmatprep.subr.mxu0 0.0
        %434 = vmatpush1.msra.mxu0 0.0
        %435 = vmatprep.subr.mxu0 0.0
        %436 = vmatpush1.msra.mxu0 0.0
        %437 = vmatprep.subr.mxu0 0.0
        %438 = vmatpush1.msra.mxu0 0.0
        %439 = vmatprep.subr.mxu0 0.0
        %440 = vmatpush1.msra.mxu0 0.0
        %441 = vmatprep.mubr.f32.mxu0 0.0
        %442 = vmatmul.mubr.f32.gmra.mrb[0].mxu0 %v370
        %v443 = vpop.f32.mrb[0].mxu0
        %v444 = vadd.f32 %v364, %v443
        %v445 = vpop.f32.mrb[0].mxu0
        %v446 = vadd.f32 %v364, %v445
        %447 = vdwg.mxu0
        %448 = vst [vmem:[%s328] sm:$0xff] %v444
        %449 = vst [vmem:[%s328 + $0x8] sm:$0xff] %v446
        %v450 = vld [vmem:[%s4] sm:$0xff]
        %v451 = vld [vmem:[%s354] sm:$0xff]
        %v452 = vld [vmem:[%s354 + $0x8] sm:$0xff]
        %v453 = vld [vmem:[%s354 + $0x10] sm:$0xf]
        %v454 = vld [vmem:[%s354 + $0x18] sm:$0xf]
        %v455 = vld [vmem:[%s5] sm:$0xff]
        %457 = vset.pattern.permute.xlu0 0
        %458 = vperm.xlu0 %457, %v455
        %v459 = vpop.permute.xlu0 %458
        %vm461 = vcmask 97280
        %v463 = vsel %vm461, %v450, 0
        %v466 = vsel %vm372, %v453, 0
        %v469 = vsel %vm372, %v454, 0
        %471 = vmatprep.subr.mxu0 %v452
        %472 = vmatpush1.msra.mxu0 %v451
        %473 = vmatprep.subr.mxu0 %v469
        %474 = vmatpush1.msra.mxu0 %v466
        %475 = vmatprep.subr.mxu0 0.0
        %476 = vmatpush1.msra.mxu0 0.0
        %477 = vmatprep.subr.mxu0 0.0
        %478 = vmatpush1.msra.mxu0 0.0
        %479 = vmatprep.subr.mxu0 0.0
        %480 = vmatpush1.msra.mxu0 0.0
        %481 = vmatprep.subr.mxu0 0.0
        %482 = vmatpush1.msra.mxu0 0.0
        %483 = vmatprep.subr.mxu0 0.0
        %484 = vmatpush1.msra.mxu0 0.0
        %485 = vmatprep.subr.mxu0 0.0
        %486 = vmatpush1.msra.mxu0 0.0
        %487 = vmatprep.subr.mxu0 0.0
        %488 = vmatpush1.msra.mxu0 0.0
        %489 = vmatprep.subr.mxu0 0.0
        %490 = vmatpush1.msra.mxu0 0.0
        %491 = vmatprep.subr.mxu0 0.0
        %492 = vmatpush1.msra.mxu0 0.0
        %493 = vmatprep.subr.mxu0 0.0
        %494 = vmatpush1.msra.mxu0 0.0
        %495 = vmatprep.subr.mxu0 0.0
        %496 = vmatpush1.msra.mxu0 0.0
        %497 = vmatprep.subr.mxu0 0.0
        %498 = vmatpush1.msra.mxu0 0.0
        %499 = vmatprep.subr.mxu0 0.0
        %500 = vmatpush1.msra.mxu0 0.0
        %501 = vmatprep.subr.mxu0 0.0
        %502 = vmatpush1.msra.mxu0 0.0
        %503 = vmatprep.subr.mxu0 0.0
        %504 = vmatpush1.msra.mxu0 0.0
        %505 = vmatprep.subr.mxu0 0.0
        %506 = vmatpush1.msra.mxu0 0.0
        %507 = vmatprep.subr.mxu0 0.0
        %508 = vmatpush1.msra.mxu0 0.0
        %509 = vmatprep.subr.mxu0 0.0
        %510 = vmatpush1.msra.mxu0 0.0
        %511 = vmatprep.subr.mxu0 0.0
        %512 = vmatpush1.msra.mxu0 0.0
        %513 = vmatprep.subr.mxu0 0.0
        %514 = vmatpush1.msra.mxu0 0.0
        %515 = vmatprep.subr.mxu0 0.0
        %516 = vmatpush1.msra.mxu0 0.0
        %517 = vmatprep.subr.mxu0 0.0
        %518 = vmatpush1.msra.mxu0 0.0
        %519 = vmatprep.subr.mxu0 0.0
        %520 = vmatpush1.msra.mxu0 0.0
        %521 = vmatprep.subr.mxu0 0.0
        %522 = vmatpush1.msra.mxu0 0.0
        %523 = vmatprep.subr.mxu0 0.0
        %524 = vmatpush1.msra.mxu0 0.0
        %525 = vmatprep.subr.mxu0 0.0
        %526 = vmatpush1.msra.mxu0 0.0
        %527 = vmatprep.subr.mxu0 0.0
        %528 = vmatpush1.msra.mxu0 0.0
        %529 = vmatprep.subr.mxu0 0.0
        %530 = vmatpush1.msra.mxu0 0.0
        %531 = vmatprep.subr.mxu0 0.0
        %532 = vmatpush1.msra.mxu0 0.0
        %533 = vmatprep.subr.mxu0 0.0
        %534 = vmatpush1.msra.mxu0 0.0
        %535 = vmatprep.mubr.f32.mxu0 0.0
        %536 = vmatmul.mubr.f32.gmra.mrb[0].mxu0 %v463
        %v537 = vpop.f32.mrb[0].mxu0
        %v538 = vadd.f32 %v459, %v537
        %v539 = vpop.f32.mrb[0].mxu0
        %v540 = vadd.f32 %v459, %v539
        %541 = vdwg.mxu0
        %542 = vst [vmem:[%s335] sm:$0xff] %v538
        %543 = vst [vmem:[%s335 + $0x8] sm:$0xff] %v540
        %s544 = sand.u32 %s187, 1
        %s545 = scalar_lea.sflag [#allocation3], %s544
        %s546 = sand.u32 %s187, 1
        %s547 = smul.addr %s546, 16
        %s548 = scalar_lea.vmem [#allocation2], %s547
        %s549 = sand.u32 %s215, 1
        %s550 = scalar_lea.sflag [#allocation5], %s549
        %s551 = sand.u32 %s215, 1
        %s552 = smul.addr %s551, 16
        %s553 = scalar_lea.vmem [#allocation4], %s552
        // Predicated region
        $region45: #{tpu_custom_call.1} parent=43 // pred_check
          %p554 = pneg %p197
        $region46: #{tpu_custom_call.1} parent=43 // pred_check_branch
          %556 = sbr.rel (%p554) target = $region48
        $region47: #{tpu_custom_call.1} parent=43 // pred_region
          %s557 = smul.u32 2, %s30
          %s559 = ssub.s32 256, 256
          %560 = vsyncadd %s545, %s559
          %s561 = smul.addr %s29, 2
          %s562 = sadd.s32 %s557, %s561
          %s563 = smul.addr %s562, 128
          %s564 = scalar_lea.hbm %s6, %s563
          %s566 = sshll.u32 %s548, 4
          %s567 = int_to_ptr.vmem [resolvable:$true] %s566
          %569 = dma.vmem_to_hbm [thread:$0]  %s567, 256, %s564, %s545
        $region48: #{tpu_custom_call.1} parent=43 // pred_fallthru
          _
        // Predicated region
        $region49: #{tpu_custom_call.1} parent=43 // pred_check
          %p570 = pneg %p225
        $region50: #{tpu_custom_call.1} parent=43 // pred_check_branch
          %572 = sbr.rel (%p570) target = $region52
        $region51: #{tpu_custom_call.1} parent=43 // pred_region
          %s573 = smul.u32 2, %s30
          %s575 = ssub.s32 256, 256
          %576 = vsyncadd %s550, %s575
          %s577 = smul.addr %s29, 2
          %s578 = sadd.s32 %s573, %s577
          %s579 = smul.addr %s578, 128
          %s580 = scalar_lea.hbm %s7, %s579
          %s582 = sshll.u32 %s553, 4
          %s583 = int_to_ptr.vmem [resolvable:$true] %s582
          %585 = dma.vmem_to_hbm [thread:$0]  %s583, 256, %s580, %s550
        $region52: #{tpu_custom_call.1} parent=43 // pred_fallthru
          _
      $region44: #{tpu_custom_call.1} parent=5 // pred_fallthru
        _
      %p586 = scmp.le.s32.totalorder 2, %s20
      // Predicated region
      $region53: #{tpu_custom_call.1} parent=5 // pred_check
        %p587 = pneg %p586
      $region54: #{tpu_custom_call.1} parent=5 // pred_check_branch
        %589 = sbr.rel (%p587) target = $region56
      $region55: #{tpu_custom_call.1} parent=5 // pred_region
        %s590 = ssub.s32 %s20, 2
        // Predicated region
        $region57: #{tpu_custom_call.1} parent=55 // pred_check
          %p591 = pneg %p203
        $region58: #{tpu_custom_call.1} parent=55 // pred_check_branch
          %593 = sbr.rel (%p591) target = $region60
        $region59: #{tpu_custom_call.1} parent=55 // pred_region
          %s594 = sand.u32 %s188, 1
          %s595 = scalar_lea.sflag [#allocation3], %s594
          %s596 = sand.u32 %s188, 1
          %s597 = smul.addr %s596, 16
          %s598 = scalar_lea.vmem [#allocation2], %s597
          %599 = dma.done %s595, 256
        $region60: #{tpu_custom_call.1} parent=55 // pred_fallthru
          _
        // Predicated region
        $region61: #{tpu_custom_call.1} parent=55 // pred_check
          %p600 = pneg %p231
        $region62: #{tpu_custom_call.1} parent=55 // pred_check_branch
          %602 = sbr.rel (%p600) target = $region64
        $region63: #{tpu_custom_call.1} parent=55 // pred_region
          %s603 = sand.u32 %s216, 1
          %s604 = scalar_lea.sflag [#allocation5], %s603
          %s605 = sand.u32 %s216, 1
          %s606 = smul.addr %s605, 16
          %s607 = scalar_lea.vmem [#allocation4], %s606
          %608 = dma.done %s604, 256
        $region64: #{tpu_custom_call.1} parent=55 // pred_fallthru
          _
      $region56: #{tpu_custom_call.1} parent=5 // pred_fallthru
        _
    $region6: #{tpu_custom_call.1} parent=1 // loop_footer
      %s24 = sadd.s32 1, %s20
    $region7: #{tpu_custom_call.1} parent=1 // loop_footer_branch
      %19 = sbr.rel target = $region3
    $region8: #{tpu_custom_call.1} parent=1 // loop_exit
      _
    %609 = vsyncpa [#allocation3], 1
    %s610 = scalar_lea.sflag [#allocation3], 1
    %611 = vsyncpa %s610, 1
    %612 = vsyncpa [#allocation5], 1
    %s613 = scalar_lea.sflag [#allocation5], 1
    %614 = vsyncpa %s613, 1

</llo_original>
